<compile_context>
chip_gen: v6e
topology: v6e:2x2x1
jax: 0.10.0
libtpu: 0.0.40
codegen_flags: <defaults>
</compile_context>

<pallas_src>
import functools

import jax
import jax.numpy as jnp
from jax.experimental import pallas as pl
from jax.experimental.pallas import tpu as pltpu

_SUB = 32      # row-tile granularity: covers f32 (8) and bf16 (16) sublane tiles
_LANES = 128


def _round_up(x: int, m: int) -> int:
    return ((x + m - 1) // m) * m


def _vmem_capacity_bytes() -> int:
    """Physical VMEM per core (128 MiB v5e/v6e, 64 MiB v7x); conservative fallback."""
    try:
        v = getattr(pltpu.get_tpu_info(), "vmem_capacity_bytes", None)
        if v:
            return int(v)
    except Exception:
        pass
    return 64 * 1024 * 1024


def _tensorcore_count() -> int:
    """TensorCores per device: 1 on v5e/v6e, 2 on v7x.  Conservative fallback 1."""
    try:
        info = pltpu.get_tpu_info()
        for name in ("num_tensorcores", "tensorcore_count", "num_cores", "core_count"):
            v = getattr(info, name, None)
            if v:
                return max(1, int(v))
    except Exception:
        pass
    try:
        return max(1, int(getattr(jax.devices()[0], "num_cores", 1)))
    except Exception:
        return 1


def _elbo_kernel(logp_ref, ltgt_ref, out_ref, *, groups):
    """Accumulates sum_i logp[i, target[i]] as a lane/sublane-resident vector partial.

    logp_ref : (TRP, W)  f32/bf16 VMEM  lane-packed log-probs (G rows per W lanes)
    ltgt_ref : (TRP, G)  i32      VMEM  lane index of each packed row's target
    out_ref  : (8, 128)  f32      VMEM  per-split vector partial accumulator
    """
    i = pl.program_id(1)                 # row-tile (reduction) axis

    @pl.when(i == 0)
    def _init():
        out_ref[...] = jnp.zeros_like(out_ref)

    x = logp_ref[...].astype(jnp.float32)            # (TRP, W); bf16 upcast on VPU
    lt = ltgt_ref[...]                               # (TRP, G) i32
    trp, w = x.shape

    # Single-vreg lane iota (not regenerated for every sublane row of the tile).
    lane = jax.lax.broadcasted_iota(jnp.int32, (1, w), 1)

    # TODO(synk): on v7x the G compares + ORs leave this VALU-bound for small C;
    # an XLU lane-repeat expansion of lt (one compare/select per lane) would cut
    # it to ~4 VALU ops/element.
    match = lane == lt[:, 0:1]
    for g in range(1, groups):                       # static, tiny unroll
        match = jnp.logical_or(match, lane == lt[:, g:g + 1])

    vals = jnp.where(match, x, 0.0)                  # (TRP, W) f32

    # Reduce only over whole sublane row-groups (pure vreg adds, no XLU); the
    # final cross-lane/sublane reduce and the scale happen once in the wrapper.
    partial = vals.reshape(trp // 8, 8, w).sum(axis=0)    # (8, W)

    if w == _LANES:
        out_ref[...] += partial
    elif w < _LANES:                                 # non-divisor C: masked lanes
        out_ref[:, :w] += partial
    else:                                            # C > 128: fold lane chunks
        nfull = w // _LANES
        for j in range(nfull):
            out_ref[...] += partial[:, j * _LANES:(j + 1) * _LANES]
        rem = w - nfull * _LANES
        if rem:
            out_ref[:, :rem] += partial[:, nfull * _LANES:]


def elbo(logp, target, kl, beta, *, train_size,
         max_rows_per_tile=8192, num_splits=None):
    """ELBO.forward: nll_loss(logp, target, 'mean') * train_size + beta * kl."""
    n, c = logp.shape
    if logp.dtype not in (jnp.float32, jnp.bfloat16):
        logp = logp.astype(jnp.float32)   # bf16 is kept as-is: halves HBM traffic
    target = target.astype(jnp.int32)

    # --- lane packing (dense lanes when C <= 128) --------------------------------
    # NOTE: if 128 % C != 0 the packed width W < 128 and loads pay masked lanes.
    groups = max(1, _LANES // c)
    w = groups * c

    # --- row-tile size: multiple of _SUB, generation-aware VMEM budget -----------
    itemsize = jnp.dtype(logp.dtype).itemsize
    bytes_per_packed_row = _round_up(w, _LANES) * itemsize + _LANES * 4
    vmem_cap = _vmem_capacity_bytes()
    vmem_budget = min(vmem_cap // 4, 20 * 1024 * 1024)   # double-buffered inputs
    trp = vmem_budget // (2 * bytes_per_packed_row)
    trp = max(_SUB, min(max_rows_per_tile, trp) // _SUB * _SUB)

    np_rows = -(-n // groups)                         # packed rows before padding
    trp = min(trp, _round_up(np_rows, _SUB))          # don't over-pad tiny inputs
    n_tiles = -(-np_rows // trp)

    splits = _tensorcore_count() if num_splits is None else int(num_splits)
    splits = splits if n_tiles >= splits else 1
    tiles_per_split = -(-n_tiles // splits)
    np_pad = splits * tiles_per_split * trp
    n_pad = np_pad * groups

    if n_pad != n:
        # Padded rows get target = W, which matches no lane -> contribute 0.
        logp = jnp.pad(logp, ((0, n_pad - n), (0, 0)))
        target = jnp.pad(target, (0, n_pad - n), constant_values=w)

    logp_packed = logp.reshape(np_pad, w)             # free row-major reshape
    lane_tgt = target.reshape(np_pad, groups) + (
        jnp.arange(groups, dtype=jnp.int32)[None, :] * c)    # g*C + target

    kernel = functools.partial(_elbo_kernel, groups=groups)

    # TODO(synk): verify via xprof that the small (trp, G) lane_tgt DMA stays
    # hidden under the logp DMA at large trp; repack it lane-densely if exposed.
    partials = pl.pallas_call(
        kernel,
        out_shape=jax.ShapeDtypeStruct((8, splits * _LANES), jnp.float32),
        grid=(splits, tiles_per_split),
        in_specs=[
            pl.BlockSpec((trp, w), lambda s, i: (s * tiles_per_split + i, 0)),
            pl.BlockSpec((trp, groups), lambda s, i: (s * tiles_per_split + i, 0)),
        ],
        out_specs=pl.BlockSpec((8, _LANES), lambda s, i: (0, s)),
        compiler_params=pltpu.CompilerParams(
            dimension_semantics=("parallel", "arbitrary"),
            vmem_limit_bytes=32 * 1024 * 1024),
    )(logp_packed, lane_tgt)

    # Final cross-lane/sublane fold + folded (-train_size / N_true) scale + beta*kl.
    scale = -float(train_size) / float(n)
    nll_sum = jnp.sum(partials)
    return nll_sum * scale + jnp.asarray(beta, jnp.float32) * jnp.asarray(kl, jnp.float32)


if __name__ == "__main__":
    key = jax.random.PRNGKey(0)
    (k1_logits, k1_tgt, k_kl,
     k2_logits, k2_tgt, k3_logits, k3_tgt) = jax.random.split(key, 7)

    kl = jax.random.uniform(k_kl, (), dtype=jnp.float32) * 10.0
    beta = jnp.float32(0.25)

    # --- test 1: toy shape (single tile, single split) ---------------------------
    N1, C1, ts1 = 8, 32, 1000
    logits1 = jax.random.normal(k1_logits, (N1, C1), dtype=jnp.float32)
    logp1 = jax.nn.log_softmax(logits1, axis=-1)      # NLL expects log-probs
    tgt1 = jax.random.randint(k1_tgt, (N1,), 0, C1, dtype=jnp.int32)

    out1 = jax.block_until_ready(elbo(logp1, tgt1, kl, beta, train_size=ts1))
    ref1 = -jnp.mean(logp1[jnp.arange(N1), tgt1]) * ts1 + beta * kl
    assert jnp.allclose(out1, ref1, rtol=1e-5, atol=1e-5), (out1, ref1)

    # --- test 2: multi-tile grid, 2-way split, row padding ------------------------
    N2, C2, ts2 = 1000, 32, 500
    logits2 = jax.random.normal(k2_logits, (N2, C2), dtype=jnp.float32)
    logp2 = jax.nn.log_softmax(logits2, axis=-1)
    tgt2 = jax.random.randint(k2_tgt, (N2,), 0, C2, dtype=jnp.int32)

    out2 = jax.block_until_ready(
        elbo(logp2, tgt2, kl, beta, train_size=ts2,
             max_rows_per_tile=64, num_splits=2))
    ref2 = -jnp.mean(logp2[jnp.arange(N2), tgt2]) * ts2 + beta * kl
    assert jnp.allclose(out2, ref2, rtol=1e-4, atol=1e-2), (out2, ref2)

    # --- test 3: bf16 log-probs (no wrapper f32 cast; in-kernel upcast) ----------
    N3, C3, ts3 = 512, 32, 256
    logits3 = jax.random.normal(k3_logits, (N3, C3), dtype=jnp.float32)
    logp3 = jax.nn.log_softmax(logits3, axis=-1).astype(jnp.bfloat16)
    tgt3 = jax.random.randint(k3_tgt, (N3,), 0, C3, dtype=jnp.int32)

    out3 = jax.block_until_ready(elbo(logp3, tgt3, kl, beta, train_size=ts3))
    ref3 = -jnp.mean(logp3.astype(jnp.float32)[jnp.arange(N3), tgt3]) * ts3 + beta * kl
    assert jnp.allclose(out3, ref3, rtol=1e-4, atol=1e-2), (out3, ref3)

    print("KERNEL_OK")
</pallas_src>

<mosaic_0001>
module attributes {stable_mosaic.version = 11 : i64} {
  func.func @_elbo_kernel(%arg0: i32, %arg1: i32, %arg2: memref<32x128xf32, #tpu.memory_space<vmem>>, %arg3: memref<32x4xi32, #tpu.memory_space<vmem>>, %arg4: memref<8x128xf32, #tpu.memory_space<vmem>>) attributes {dimension_semantics = [#tpu.dimension_semantics<parallel>, #tpu.dimension_semantics<arbitrary>], iteration_bounds = array<i64: 1, 1>, scalar_prefetch = 0 : i64, scratch_operands = 0 : i64, tpu.core_type = #tpu.core_type<tc>, window_params = [{transform_indices = @transform_0, window_bounds = array<i64: 32, 128>}, {transform_indices = @transform_1, window_bounds = array<i64: 32, 4>}, {transform_indices = @transform_2, window_bounds = array<i64: 8, 128>}]} {
    %c0_i32 = arith.constant 0 : i32
    %0 = arith.cmpi eq, %arg1, %c0_i32 : i32
    %1 = arith.extui %0 : i1 to i32
    %c0_i32_0 = arith.constant 0 : i32
    %2 = arith.cmpi ne, %1, %c0_i32_0 : i32
    scf.if %2 {
      %cst_9 = arith.constant 0.000000e+00 : f32
      %32 = vector.broadcast %cst_9 : f32 to vector<8x128xf32>
      %c0_10 = arith.constant 0 : index
      %c0_11 = arith.constant 0 : index
      %33 = vector.load %arg4[%c0_10, %c0_11] : memref<8x128xf32, #tpu.memory_space<vmem>>, vector<8x128xf32>
      tpu.vector_store %arg4[%c0_10, %c0_11], %32 {strides = array<i32>} : memref<8x128xf32, #tpu.memory_space<vmem>>, vector<8x128xf32>,
    } else {
    }
    %c0 = arith.constant 0 : index
    %c0_1 = arith.constant 0 : index
    %3 = vector.load %arg2[%c0, %c0_1] : memref<32x128xf32, #tpu.memory_space<vmem>>, vector<32x128xf32>
    %c0_2 = arith.constant 0 : index
    %c0_3 = arith.constant 0 : index
    %4 = vector.load %arg3[%c0_2, %c0_3] : memref<32x4xi32, #tpu.memory_space<vmem>>, vector<32x4xi32>
    %5 = tpu.iota {dimensions = array<i32: 1>} : vector<1x128xi32>
    %6 = vector.extract_strided_slice %4 {offsets = [0, 0], sizes = [32, 1], strides = [1, 1]} : vector<32x4xi32> to vector<32x1xi32>
    %7 = vector.broadcast %5 : vector<1x128xi32> to vector<32x128xi32>
    %8 = vector.broadcast %6 : vector<32x1xi32> to vector<32x128xi32>
    %9 = arith.cmpi eq, %7, %8 : vector<32x128xi32>
    %10 = vector.extract_strided_slice %4 {offsets = [0, 1], sizes = [32, 1], strides = [1, 1]} : vector<32x4xi32> to vector<32x1xi32>
    %11 = vector.broadcast %5 : vector<1x128xi32> to vector<32x128xi32>
    %12 = vector.broadcast %10 : vector<32x1xi32> to vector<32x128xi32>
    %13 = arith.cmpi eq, %11, %12 : vector<32x128xi32>
    %14 = arith.ori %9, %13 : vector<32x128xi1>
    %15 = vector.extract_strided_slice %4 {offsets = [0, 2], sizes = [32, 1], strides = [1, 1]} : vector<32x4xi32> to vector<32x1xi32>
    %16 = vector.broadcast %5 : vector<1x128xi32> to vector<32x128xi32>
    %17 = vector.broadcast %15 : vector<32x1xi32> to vector<32x128xi32>
    %18 = arith.cmpi eq, %16, %17 : vector<32x128xi32>
    %19 = arith.ori %14, %18 : vector<32x128xi1>
    %20 = vector.extract_strided_slice %4 {offsets = [0, 3], sizes = [32, 1], strides = [1, 1]} : vector<32x4xi32> to vector<32x1xi32>
    %21 = vector.broadcast %5 : vector<1x128xi32> to vector<32x128xi32>
    %22 = vector.broadcast %20 : vector<32x1xi32> to vector<32x128xi32>
    %23 = arith.cmpi eq, %21, %22 : vector<32x128xi32>
    %24 = arith.ori %19, %23 : vector<32x128xi1>
    %cst = arith.constant 0.000000e+00 : f32
    %25 = vector.broadcast %cst : f32 to vector<32x128xf32>
    %26 = arith.select %24, %3, %25 : vector<32x128xi1>, vector<32x128xf32>
    %27 = vector.shape_cast %26 : vector<32x128xf32> to vector<4x8x128xf32>
    %cst_4 = arith.constant dense<0.000000e+00> : vector<8x128xf32>
    %28 = vector.multi_reduction <add>, %27, %cst_4 [0] : vector<4x8x128xf32> to vector<8x128xf32>
    %c0_5 = arith.constant 0 : index
    %c0_6 = arith.constant 0 : index
    %29 = vector.load %arg4[%c0_5, %c0_6] : memref<8x128xf32, #tpu.memory_space<vmem>>, vector<8x128xf32>
    %30 = arith.addf %29, %28 : vector<8x128xf32>
    %c0_7 = arith.constant 0 : index
    %c0_8 = arith.constant 0 : index
    %31 = vector.load %arg4[%c0_7, %c0_8] : memref<8x128xf32, #tpu.memory_space<vmem>>, vector<8x128xf32>
    tpu.vector_store %arg4[%c0_7, %c0_8], %30 {strides = array<i32>} : memref<8x128xf32, #tpu.memory_space<vmem>>, vector<8x128xf32>,
    return
  }
  func.func @transform_0(%arg0: i32, %arg1: i32) -> (i32, i32) {
    %c1_i32 = arith.constant 1 : i32
    %0 = arith.muli %arg0, %c1_i32 : i32
    %1 = arith.addi %0, %arg1 : i32
    %c0_i32 = arith.constant 0 : i32
    %c0_i32_0 = arith.constant 0 : i32
    return %1, %c0_i32 : i32, i32
  }
  func.func @transform_1(%arg0: i32, %arg1: i32) -> (i32, i32) {
    %c1_i32 = arith.constant 1 : i32
    %0 = arith.muli %arg0, %c1_i32 : i32
    %1 = arith.addi %0, %arg1 : i32
    %c0_i32 = arith.constant 0 : i32
    %c0_i32_0 = arith.constant 0 : i32
    return %1, %c0_i32 : i32, i32
  }
  func.func @transform_2(%arg0: i32, %arg1: i32) -> (i32, i32) {
    %c0_i32 = arith.constant 0 : i32
    %c0_i32_0 = arith.constant 0 : i32
    return %c0_i32, %arg0 : i32, i32
  }
}

</mosaic_0001>

<llo_original>
// kernel: tpu_custom_call.1
$region0: #{tpu_custom_call.1}
  #allocation0 [shape = 'u32[]', space=smem, size = 0x4, offset = 0x4, fixed_abs, tag = 'smem constant byte address 0x4 - core index']
  #allocation1 [shape = 'u32[144,128]{1,0:T(1,128)}', space=vmem, size = 0x12000, scoped, tag = 'internal scratch']
  %s0 = inlined_call_operand.vmem [shape: f32[32,128], index: 0, kind: input, shape index: {}]
  %s1 = inlined_call_operand.vmem [shape: s32[32,4], index: 1, kind: input, shape index: {}]
  %s2 = inlined_call_operand.hbm [shape: f32[8,128], index: 2, kind: output, shape index: {}]
  %s3 = sld [smem:[#allocation0]]
  $region22: #{tpu_custom_call.1} parent=0
    _
  %s5 = ssub.s32 1, %s3
  %s6 = scalar_select 0, %s5, %s3
  $region1: #{tpu_custom_call.1} parent=0
    #allocation2 [shape = 'u8[4096]{0}', space=vmem, size = 0x1000, scoped, tag = 'output window, operand 0, single buffered']
    #allocation3 [shape = 's32[1]{0}', space=sflag, size = 0x4, scoped, tag = 'scoped memory for tpu_custom_call.1']
    %7 = vsyncpa [#allocation3], 0
    // Predicated region
    $region2: #{tpu_custom_call.1} parent=1 // pred_check
      _
    $region3: #{tpu_custom_call.1} parent=1 // pred_check_branch
      %9 = sbr.rel (0) target = $region5
    $region4: #{tpu_custom_call.1} parent=1 // pred_region
      %s10 = sadd.s32 0, 0
      %s11 = smul.u32 4, %s10
      %p12 = scmp.lt.s32.totalorder %s11, 3
      %s13 = scalar_select %p12, %s11, 3
      %s14 = smul.addr %s13, 8
      %s15 = scalar_lea.vmem %s0, %s14
      %s16 = sadd.s32 0, 0
      %s17 = smul.u32 4, %s16
    $region5: #{tpu_custom_call.1} parent=1 // pred_fallthru
      _
    // Predicated region
    $region6: #{tpu_custom_call.1} parent=1 // pred_check
      _
    $region7: #{tpu_custom_call.1} parent=1 // pred_check_branch
      %19 = sbr.rel (0) target = $region9
    $region8: #{tpu_custom_call.1} parent=1 // pred_region
      %s20 = sadd.s32 0, 0
      %s21 = smul.u32 4, %s20
      %p22 = scmp.lt.s32.totalorder %s21, 3
      %s23 = scalar_select %p22, %s21, 3
      %s24 = smul.addr %s23, 8
      %s25 = scalar_lea.vmem %s1, %s24
      %s26 = sadd.s32 0, 0
      %s27 = smul.u32 4, %s26
    $region9: #{tpu_custom_call.1} parent=1 // pred_fallthru
      _
    %s28 = sadd.s32 0, 0
    %s29 = smul.u32 4, %s28
    %p30 = scmp.lt.s32.totalorder %s29, 3
    %s31 = scalar_select %p30, %s29, 3
    %s32 = smul.addr %s31, 8
    %s33 = scalar_lea.vmem %s0, %s32
    %s34 = sadd.s32 0, 0
    %s35 = smul.u32 4, %s34
    %p36 = scmp.lt.s32.totalorder %s35, 3
    %s37 = scalar_select %p36, %s35, 3
    %s38 = smul.addr %s37, 8
    %s39 = scalar_lea.vmem %s1, %s38
    %s40 = sadd.s32 0, 0
    %s41 = smul.u32 4, %s40
    %p42 = scmp.lt.s32.totalorder %s41, 3
    %s43 = scalar_select %p42, %s41, 3
    %s44 = smul.addr %s43, 8
    %s45 = scalar_lea.vmem %s0, %s44
    %s46 = sadd.s32 0, 0
    %s47 = smul.u32 4, %s46
    %s48 = sadd.s32 0, 0
    %s49 = smul.u32 4, %s48
    %p50 = scmp.lt.s32.totalorder %s49, 3
    %s51 = scalar_select %p50, %s49, 3
    %s52 = smul.addr %s51, 8
    %s53 = scalar_lea.vmem %s1, %s52
    %s54 = sadd.s32 0, 0
    %s55 = smul.u32 4, %s54
    %p56 = scmp.eq.s32.totalorder 0, 0
    // Predicated region
    $region10: #{tpu_custom_call.1} parent=1 // pred_check
      %p57 = pneg %p56
    $region11: #{tpu_custom_call.1} parent=1 // pred_check_branch
      %59 = sbr.rel (%p57) target = $region13
    $region12: #{tpu_custom_call.1} parent=1 // pred_region
      %60 = vst [vmem:[#allocation2] sm:$0xff] 0.0
    $region13: #{tpu_custom_call.1} parent=1 // pred_fallthru
      _
    %v61 = vld [vmem:[%s45] sm:$0xff]
    %v62 = vld [vmem:[%s45 + $0x8] sm:$0xff]
    %v63 = vld [vmem:[%s45 + $0x10] sm:$0xff]
    %v64 = vld [vmem:[%s45 + $0x18] sm:$0xff]
    %v65 = vld [vmem:[%s53] sm:$0xff]
    %v66 = vld [vmem:[%s53 + $0x8] sm:$0xff]
    %v67 = vld [vmem:[%s53 + $0x10] sm:$0xff]
    %v68 = vld [vmem:[%s53 + $0x18] sm:$0xff]
    %v69 = vlaneseq
    %v70 = vand.u32 %v69, 127
    %71 = vset.pattern.permute.xlu0 0
    %72 = vperm.xlu0 %71, %v65
    %v73 = vpop.permute.xlu0 %72
    %74 = vset.pattern.permute.xlu0 0
    %75 = vperm.xlu0 %74, %v66
    %v76 = vpop.permute.xlu0 %75
    %77 = vset.pattern.permute.xlu0 0
    %78 = vperm.xlu0 %77, %v67
    %v79 = vpop.permute.xlu0 %78
    %80 = vset.pattern.permute.xlu0 0
    %81 = vperm.xlu0 %80, %v68
    %v82 = vpop.permute.xlu0 %81
    %vm83 = vcmp.eq.s32.totalorder %v70, %v73
    %vm84 = vcmp.eq.s32.totalorder %v70, %v76
    %vm85 = vcmp.eq.s32.totalorder %v70, %v79
    %vm86 = vcmp.eq.s32.totalorder %v70, %v82
    %87 = vset.pattern.permute.xlu0 1
    %88 = vperm.xlu0 %87, %v65
    %v89 = vpop.permute.xlu0 %88
    %90 = vset.pattern.permute.xlu0 1
    %91 = vperm.xlu0 %90, %v66
    %v92 = vpop.permute.xlu0 %91
    %93 = vset.pattern.permute.xlu0 1
    %94 = vperm.xlu0 %93, %v67
    %v95 = vpop.permute.xlu0 %94
    %96 = vset.pattern.permute.xlu0 1
    %97 = vperm.xlu0 %96, %v68
    %v98 = vpop.permute.xlu0 %97
    %vm99 = vcmp.eq.s32.totalorder %v70, %v89
    %vm100 = vcmp.eq.s32.totalorder %v70, %v92
    %vm101 = vcmp.eq.s32.totalorder %v70, %v95
    %vm102 = vcmp.eq.s32.totalorder %v70, %v98
    %vm103 = vmor %vm83, %vm99
    %vm104 = vmor %vm84, %vm100
    %vm105 = vmor %vm85, %vm101
    %vm106 = vmor %vm86, %vm102
    %107 = vset.pattern.permute.xlu0 2
    %108 = vperm.xlu0 %107, %v65
    %v109 = vpop.permute.xlu0 %108
    %110 = vset.pattern.permute.xlu0 2
    %111 = vperm.xlu0 %110, %v66
    %v112 = vpop.permute.xlu0 %111
    %113 = vset.pattern.permute.xlu0 2
    %114 = vperm.xlu0 %113, %v67
    %v115 = vpop.permute.xlu0 %114
    %116 = vset.pattern.permute.xlu0 2
    %117 = vperm.xlu0 %116, %v68
    %v118 = vpop.permute.xlu0 %117
    %vm119 = vcmp.eq.s32.totalorder %v70, %v109
    %vm120 = vcmp.eq.s32.totalorder %v70, %v112
    %vm121 = vcmp.eq.s32.totalorder %v70, %v115
    %vm122 = vcmp.eq.s32.totalorder %v70, %v118
    %vm123 = vmor %vm103, %vm119
    %vm124 = vmor %vm104, %vm120
    %vm125 = vmor %vm105, %vm121
    %vm126 = vmor %vm106, %vm122
    %127 = vset.pattern.permute.xlu0 3
    %128 = vperm.xlu0 %127, %v65
    %v129 = vpop.permute.xlu0 %128
    %130 = vset.pattern.permute.xlu0 3
    %131 = vperm.xlu0 %130, %v66
    %v132 = vpop.permute.xlu0 %131
    %133 = vset.pattern.permute.xlu0 3
    %134 = vperm.xlu0 %133, %v67
    %v135 = vpop.permute.xlu0 %134
    %136 = vset.pattern.permute.xlu0 3
    %137 = vperm.xlu0 %136, %v68
    %v138 = vpop.permute.xlu0 %137
    %vm139 = vcmp.eq.s32.totalorder %v70, %v129
    %vm140 = vcmp.eq.s32.totalorder %v70, %v132
    %vm141 = vcmp.eq.s32.totalorder %v70, %v135
    %vm142 = vcmp.eq.s32.totalorder %v70, %v138
    %vm143 = vmor %vm123, %vm139
    %vm144 = vmor %vm124, %vm140
    %vm145 = vmor %vm125, %vm141
    %vm146 = vmor %vm126, %vm142
    %v147 = vsel %vm143, %v61, 0.0
    %v148 = vsel %vm144, %v62, 0.0
    %v149 = vsel %vm145, %v63, 0.0
    %v150 = vsel %vm146, %v64, 0.0
    %v151 = vadd.f32 %v147, %v148
    %v152 = vadd.f32 %v151, %v149
    %v153 = vadd.f32 %v152, %v150
    %v154 = vld [vmem:[#allocation2] sm:$0xff]
    %v155 = vadd.f32 %v154, %v153
    %156 = vst [vmem:[#allocation2] sm:$0xff] %v155
    // Predicated region
    $region14: #{tpu_custom_call.1} parent=1 // pred_check
      _
    $region15: #{tpu_custom_call.1} parent=1 // pred_check_branch
      %158 = sbr.rel (0) target = $region17
    $region16: #{tpu_custom_call.1} parent=1 // pred_region
      %s160 = ssub.s32 128, 128
      %161 = vsyncadd [#allocation3], %s160
      %s163 = sshll.u32 [#allocation2], 4
      %s164 = int_to_ptr.vmem [resolvable:$true] %s163
      %166 = dma.vmem_to_hbm [thread:$0]  %s164, 128, %s2, [#allocation3]
    $region17: #{tpu_custom_call.1} parent=1 // pred_fallthru
      _
    // Predicated region
    $region18: #{tpu_custom_call.1} parent=1 // pred_check
      _
    $region19: #{tpu_custom_call.1} parent=1 // pred_check_branch
      %168 = sbr.rel (0) target = $region21
    $region20: #{tpu_custom_call.1} parent=1 // pred_region
      %169 = dma.done [#allocation3], 128
    $region21: #{tpu_custom_call.1} parent=1 // pred_fallthru
      _
    %170 = vsyncpa [#allocation3], 1

</llo_original>
